<compile_context>
chip_gen: v5e
topology: v5e:2x2
jax: 0.10.0
libtpu: 0.0.40
codegen_flags: <defaults>
</compile_context>

<pallas_src>
import numpy as np
import jax
import jax.numpy as jnp
from jax.experimental import pallas as pl
from jax.experimental.pallas import tpu as pltpu


# ----------------------------------------------------------------------------
# Mask construction (deterministic, mirrors CMADE.initialise_masks with
# natural_ordering=True, num_masks=1, layer_norm=False).
# ----------------------------------------------------------------------------
def build_masks(in_features, cond_features, hidden_sizes, out_features, seed=0):
    assert out_features % in_features == 0, "CMADE requires out_features % in_features == 0"
    rng = np.random.RandomState(seed)
    L = len(hidden_sizes)

    # degree of each input unit: 0 for conditioning features, 0..in-1 for x features
    m_prev = np.concatenate(
        [np.zeros(cond_features, dtype=np.int64), np.arange(in_features, dtype=np.int64)]
    )
    m_input = m_prev.copy()

    masks = []
    for l in range(L):
        if in_features - 1 == 0:
            m_l = np.zeros(hidden_sizes[l], dtype=np.int64)
        else:
            low = int(m_prev.min())
            # NOTE: for in_features <= 2 the reference rng.randint(low, in-1) is
            # degenerate; this guard keeps the kernel path well-defined.
            high = max(in_features - 1, low + 1)
            m_l = rng.randint(low, high, size=(hidden_sizes[l],))
        masks.append((m_prev[:, None] <= m_l[None, :]).astype(np.float32))
        m_prev = m_l

    # output mask: strictly-less connectivity to the x-features ordering
    last = (m_prev[:, None] < m_input[-in_features:][None, :]).astype(np.float32)
    if out_features > in_features:
        k = out_features // in_features
        last = np.concatenate([last] * k, axis=-1)
    masks.append(last)
    return [jnp.asarray(m) for m in masks]


# ----------------------------------------------------------------------------
# Deterministic parameter init (same shapes as nn.Linear: W stored (in, out)).
# ----------------------------------------------------------------------------
def init_params(key, layer_sizes):
    params = []
    for (h0, h1) in zip(layer_sizes, layer_sizes[1:]):
        key, kw, kb = jax.random.split(key, 3)
        bound = 1.0 / np.sqrt(h0)
        W = jax.random.uniform(kw, (h0, h1), jnp.float32, -bound, bound)
        b = jax.random.uniform(kb, (1, h1), jnp.float32, -bound, bound)
        params.append((W, b))
    return params


# ----------------------------------------------------------------------------
# One-time weight preprocessing: fold the static MADE masks into the weights
# and split the first-layer weight over the (c, x) concatenation.  This runs
# ONCE, not per forward call, so the per-call path has no extra XLA ops.
# ----------------------------------------------------------------------------
def prepare_params(masks, params, cond_features):
    Wm = [m * W for (W, _), m in zip(params, masks)]
    biases = [b for (_, b) in params]
    Wc, Wx = Wm[0][:cond_features], Wm[0][cond_features:]
    rest = [(Wm[i], biases[i]) for i in range(1, len(params))]
    return {"Wc": Wc, "Wx": Wx, "b1": biases[0], "rest": rest}


# ----------------------------------------------------------------------------
# Pallas kernel: batch-tiled masked-MLP forward.  Weights arrive pre-masked
# and resident in VMEM; the first layer consumes c and x separately; the last
# layer writes the true (tile_b, out_f) block (no lane padding).
# ----------------------------------------------------------------------------
def _make_kernel(n_layers):
    def kernel(*refs):
        c_ref, x_ref = refs[0], refs[1]
        out_ref = refs[-1]

        # first layer: split matmul over the (c, x) concatenation
        wc_ref, wx_ref, b1_ref = refs[2], refs[3], refs[4]
        h = (
            jnp.dot(c_ref[...], wc_ref[...], preferred_element_type=jnp.float32)
            + jnp.dot(x_ref[...], wx_ref[...], preferred_element_type=jnp.float32)
            + b1_ref[...]
        )
        if n_layers > 1:
            h = jnp.maximum(h, 0.0)

        for i in range(1, n_layers):
            w_ref, b_ref = refs[5 + 2 * (i - 1)], refs[6 + 2 * (i - 1)]
            h = jnp.dot(h, w_ref[...], preferred_element_type=jnp.float32) + b_ref[...]
            if i < n_layers - 1:
                h = jnp.maximum(h, 0.0)  # ReLU on all but the last layer

        out_ref[...] = h.astype(out_ref.dtype)

    return kernel


def cmade_forward(c, x, prepared, *, tile_b=1024):
    B, cond = c.shape
    _, in_f = x.shape
    Wc, Wx, b1 = prepared["Wc"], prepared["Wx"], prepared["b1"]
    rest = prepared["rest"]
    n_layers = 1 + len(rest)
    out_f = rest[-1][0].shape[1] if rest else Wc.shape[1]

    # ---- batch tiling: round tile_b DOWN to a multiple of 8 (robust to odd
    #      user values) and clamp to the 8-padded batch; pad B up if needed.
    B8 = ((B + 7) // 8) * 8
    tile_b = max(8, (min(tile_b, B8) // 8) * 8)
    B_pad = ((B + tile_b - 1) // tile_b) * tile_b
    if B_pad != B:
        c = jnp.pad(c, ((0, B_pad - B), (0, 0)))
        x = jnp.pad(x, ((0, B_pad - B), (0, 0)))
    grid = (B_pad // tile_b,)

    def batch_spec(feat):
        # last dim == full array extent, so the (8,128) rule is satisfied
        return pl.BlockSpec((tile_b, feat), lambda i: (i, 0))

    def resident_spec(shape):
        nd = len(shape)
        return pl.BlockSpec(shape, lambda i, _nd=nd: (0,) * _nd)

    inputs = [c, x, Wc, Wx, b1]
    in_specs = [
        batch_spec(cond),
        batch_spec(in_f),
        resident_spec(Wc.shape),
        resident_spec(Wx.shape),
        resident_spec(b1.shape),
    ]
    for (W_i, b_i) in rest:
        inputs.extend([W_i, b_i])
        in_specs.extend([resident_spec(W_i.shape), resident_spec(b_i.shape)])

    # ---- advisory cost estimate so XLA schedules neighbours around the call
    layer_dims = [(cond + in_f, Wc.shape[1])] + [(W.shape[0], W.shape[1]) for W, _ in rest]
    flops = 2 * B_pad * sum(h0 * h1 for h0, h1 in layer_dims)
    bytes_accessed = 4 * (
        B_pad * (cond + in_f + out_f) + sum(h0 * h1 + h1 for h0, h1 in layer_dims)
    )
    cost = pl.CostEstimate(flops=flops, transcendentals=0, bytes_accessed=bytes_accessed)

    out = pl.pallas_call(
        _make_kernel(n_layers),
        grid=grid,
        in_specs=in_specs,
        out_specs=pl.BlockSpec((tile_b, out_f), lambda i: (i, 0)),
        out_shape=jax.ShapeDtypeStruct((B_pad, out_f), jnp.float32),
        compiler_params=pltpu.CompilerParams(
            dimension_semantics=("parallel",),  # v7x: shard batch tiles over both TCs
        ),
        cost_estimate=cost,
    )(*inputs)

    # Leading-dim slice only (contiguous, cheap); no feature-dim slice anymore.
    return out if B_pad == B else out[:B]


# Pure-JAX reference for verification (mirrors the PyTorch module exactly).
def cmade_reference(c, x, masks, params):
    h = jnp.concatenate([c, x], axis=-1)
    n = len(params)
    for i, ((W, b), m) in enumerate(zip(params, masks)):
        h = h @ (m * W) + b
        if i < n - 1:
            h = jnp.maximum(h, 0.0)
    return h


if __name__ == "__main__":
    # Small shapes consistent with the module.
    in_features = 8
    cond_features = 8
    hidden_sizes = [32, 32]
    out_features = 16  # out_features % in_features == 0  (k = 2)
    batch = 256

    layer_sizes = [cond_features + in_features] + hidden_sizes + [out_features]
    masks = build_masks(in_features, cond_features, hidden_sizes, out_features, seed=0)
    params = init_params(jax.random.PRNGKey(0), layer_sizes)

    # One-time weight preprocessing (mask fold + first-layer split).
    prepared = prepare_params(masks, params, cond_features)

    kc, kx = jax.random.split(jax.random.PRNGKey(1))
    c = jax.random.normal(kc, (batch, cond_features), jnp.float32)
    x = jax.random.normal(kx, (batch, in_features), jnp.float32)

    # tile_b=128 here so the small test exercises a multi-step batch grid;
    # production default is 1024 (clamped to the batch) to amortize grid overhead.
    out = cmade_forward(c, x, prepared, tile_b=128)
    out = jax.block_until_ready(out)

    ref = cmade_reference(c, x, masks, params)
    assert out.shape == (batch, out_features)
    np.testing.assert_allclose(np.asarray(out), np.asarray(ref), rtol=1e-5, atol=1e-5)

    # TODO(synk): rotate_masks (num_masks > 1) and the optional LayerNorm branch are
    # not exercised by this num_masks=1 / layer_norm=False forward path.
    print("KERNEL_OK")
</pallas_src>

<mosaic_0001>
module attributes {stable_mosaic.version = 11 : i64} {
  func.func @kernel(%arg0: i32, %arg1: memref<128x8xf32, #tpu.memory_space<vmem>>, %arg2: memref<128x8xf32, #tpu.memory_space<vmem>>, %arg3: memref<8x32xf32, #tpu.memory_space<vmem>>, %arg4: memref<8x32xf32, #tpu.memory_space<vmem>>, %arg5: memref<1x32xf32, #tpu.memory_space<vmem>>, %arg6: memref<32x32xf32, #tpu.memory_space<vmem>>, %arg7: memref<1x32xf32, #tpu.memory_space<vmem>>, %arg8: memref<32x16xf32, #tpu.memory_space<vmem>>, %arg9: memref<1x16xf32, #tpu.memory_space<vmem>>, %arg10: memref<128x16xf32, #tpu.memory_space<vmem>>) attributes {dimension_semantics = [#tpu.dimension_semantics<parallel>], iteration_bounds = array<i64: 2>, scalar_prefetch = 0 : i64, scratch_operands = 0 : i64, tpu.core_type = #tpu.core_type<tc>, window_params = [{transform_indices = @transform_0, window_bounds = array<i64: 128, 8>}, {transform_indices = @transform_1, window_bounds = array<i64: 128, 8>}, {pipeline_mode = #tpu.pipeline_mode<synchronous>, transform_indices = @transform_2, window_bounds = array<i64: 8, 32>}, {pipeline_mode = #tpu.pipeline_mode<synchronous>, transform_indices = @transform_3, window_bounds = array<i64: 8, 32>}, {pipeline_mode = #tpu.pipeline_mode<synchronous>, transform_indices = @transform_4, window_bounds = array<i64: 1, 32>}, {pipeline_mode = #tpu.pipeline_mode<synchronous>, transform_indices = @transform_5, window_bounds = array<i64: 32, 32>}, {pipeline_mode = #tpu.pipeline_mode<synchronous>, transform_indices = @transform_6, window_bounds = array<i64: 1, 32>}, {pipeline_mode = #tpu.pipeline_mode<synchronous>, transform_indices = @transform_7, window_bounds = array<i64: 32, 16>}, {pipeline_mode = #tpu.pipeline_mode<synchronous>, transform_indices = @transform_8, window_bounds = array<i64: 1, 16>}, {transform_indices = @transform_9, window_bounds = array<i64: 128, 16>}]} {
    %c0 = arith.constant 0 : index
    %c0_0 = arith.constant 0 : index
    %0 = vector.load %arg1[%c0, %c0_0] : memref<128x8xf32, #tpu.memory_space<vmem>>, vector<128x8xf32>
    %c0_1 = arith.constant 0 : index
    %c0_2 = arith.constant 0 : index
    %1 = vector.load %arg3[%c0_1, %c0_2] : memref<8x32xf32, #tpu.memory_space<vmem>>, vector<8x32xf32>
    %cst = arith.constant dense<0.000000e+00> : vector<128x32xf32>
    %2 = tpu.matmul %0, %1, %cst {dimension_numbers = #tpu.dot_dimension_numbers<[1], [0], [0], [1], [0, 0, 1, 1], [], []>} : vector<128x8xf32>, vector<8x32xf32>, vector<128x32xf32> -> vector<128x32xf32>
    %c0_3 = arith.constant 0 : index
    %c0_4 = arith.constant 0 : index
    %3 = vector.load %arg2[%c0_3, %c0_4] : memref<128x8xf32, #tpu.memory_space<vmem>>, vector<128x8xf32>
    %c0_5 = arith.constant 0 : index
    %c0_6 = arith.constant 0 : index
    %4 = vector.load %arg4[%c0_5, %c0_6] : memref<8x32xf32, #tpu.memory_space<vmem>>, vector<8x32xf32>
    %cst_7 = arith.constant dense<0.000000e+00> : vector<128x32xf32>
    %5 = tpu.matmul %3, %4, %cst_7 {dimension_numbers = #tpu.dot_dimension_numbers<[1], [0], [0], [1], [0, 0, 1, 1], [], []>} : vector<128x8xf32>, vector<8x32xf32>, vector<128x32xf32> -> vector<128x32xf32>
    %6 = arith.addf %2, %5 : vector<128x32xf32>
    %c0_8 = arith.constant 0 : index
    %c0_9 = arith.constant 0 : index
    %7 = vector.load %arg5[%c0_8, %c0_9] : memref<1x32xf32, #tpu.memory_space<vmem>>, vector<1x32xf32>
    %8 = vector.broadcast %7 : vector<1x32xf32> to vector<128x32xf32>
    %9 = arith.addf %6, %8 : vector<128x32xf32>
    %cst_10 = arith.constant 0.000000e+00 : f32
    %10 = vector.broadcast %cst_10 : f32 to vector<128x32xf32>
    %11 = arith.maximumf %9, %10 : vector<128x32xf32>
    %c0_11 = arith.constant 0 : index
    %c0_12 = arith.constant 0 : index
    %12 = vector.load %arg6[%c0_11, %c0_12] : memref<32x32xf32, #tpu.memory_space<vmem>>, vector<32x32xf32>
    %cst_13 = arith.constant dense<0.000000e+00> : vector<128x32xf32>
    %13 = tpu.matmul %11, %12, %cst_13 {dimension_numbers = #tpu.dot_dimension_numbers<[1], [0], [0], [1], [0, 0, 1, 1], [], []>} : vector<128x32xf32>, vector<32x32xf32>, vector<128x32xf32> -> vector<128x32xf32>
    %c0_14 = arith.constant 0 : index
    %c0_15 = arith.constant 0 : index
    %14 = vector.load %arg7[%c0_14, %c0_15] : memref<1x32xf32, #tpu.memory_space<vmem>>, vector<1x32xf32>
    %15 = vector.broadcast %14 : vector<1x32xf32> to vector<128x32xf32>
    %16 = arith.addf %13, %15 : vector<128x32xf32>
    %cst_16 = arith.constant 0.000000e+00 : f32
    %17 = vector.broadcast %cst_16 : f32 to vector<128x32xf32>
    %18 = arith.maximumf %16, %17 : vector<128x32xf32>
    %c0_17 = arith.constant 0 : index
    %c0_18 = arith.constant 0 : index
    %19 = vector.load %arg8[%c0_17, %c0_18] : memref<32x16xf32, #tpu.memory_space<vmem>>, vector<32x16xf32>
    %cst_19 = arith.constant dense<0.000000e+00> : vector<128x16xf32>
    %20 = tpu.matmul %18, %19, %cst_19 {dimension_numbers = #tpu.dot_dimension_numbers<[1], [0], [0], [1], [0, 0, 1, 1], [], []>} : vector<128x32xf32>, vector<32x16xf32>, vector<128x16xf32> -> vector<128x16xf32>
    %c0_20 = arith.constant 0 : index
    %c0_21 = arith.constant 0 : index
    %21 = vector.load %arg9[%c0_20, %c0_21] : memref<1x16xf32, #tpu.memory_space<vmem>>, vector<1x16xf32>
    %22 = vector.broadcast %21 : vector<1x16xf32> to vector<128x16xf32>
    %23 = arith.addf %20, %22 : vector<128x16xf32>
    %c0_22 = arith.constant 0 : index
    %c0_23 = arith.constant 0 : index
    %24 = vector.load %arg10[%c0_22, %c0_23] : memref<128x16xf32, #tpu.memory_space<vmem>>, vector<128x16xf32>
    tpu.vector_store %arg10[%c0_22, %c0_23], %23 {strides = array<i32>} : memref<128x16xf32, #tpu.memory_space<vmem>>, vector<128x16xf32>,
    return
  }
  func.func @transform_0(%arg0: i32) -> (i32, i32) {
    %c0_i32 = arith.constant 0 : i32
    %c0_i32_0 = arith.constant 0 : i32
    return %arg0, %c0_i32 : i32, i32
  }
  func.func @transform_1(%arg0: i32) -> (i32, i32) {
    %c0_i32 = arith.constant 0 : i32
    %c0_i32_0 = arith.constant 0 : i32
    return %arg0, %c0_i32 : i32, i32
  }
  func.func @transform_2(%arg0: i32) -> (i32, i32) {
    %c0_i32 = arith.constant 0 : i32
    %c0_i32_0 = arith.constant 0 : i32
    %c0_i32_1 = arith.constant 0 : i32
    return %c0_i32, %c0_i32_0 : i32, i32
  }
  func.func @transform_3(%arg0: i32) -> (i32, i32) {
    %c0_i32 = arith.constant 0 : i32
    %c0_i32_0 = arith.constant 0 : i32
    %c0_i32_1 = arith.constant 0 : i32
    return %c0_i32, %c0_i32_0 : i32, i32
  }
  func.func @transform_4(%arg0: i32) -> (i32, i32) {
    %c0_i32 = arith.constant 0 : i32
    %c0_i32_0 = arith.constant 0 : i32
    %c0_i32_1 = arith.constant 0 : i32
    return %c0_i32, %c0_i32_0 : i32, i32
  }
  func.func @transform_5(%arg0: i32) -> (i32, i32) {
    %c0_i32 = arith.constant 0 : i32
    %c0_i32_0 = arith.constant 0 : i32
    %c0_i32_1 = arith.constant 0 : i32
    return %c0_i32, %c0_i32_0 : i32, i32
  }
  func.func @transform_6(%arg0: i32) -> (i32, i32) {
    %c0_i32 = arith.constant 0 : i32
    %c0_i32_0 = arith.constant 0 : i32
    %c0_i32_1 = arith.constant 0 : i32
    return %c0_i32, %c0_i32_0 : i32, i32
  }
  func.func @transform_7(%arg0: i32) -> (i32, i32) {
    %c0_i32 = arith.constant 0 : i32
    %c0_i32_0 = arith.constant 0 : i32
    %c0_i32_1 = arith.constant 0 : i32
    return %c0_i32, %c0_i32_0 : i32, i32
  }
  func.func @transform_8(%arg0: i32) -> (i32, i32) {
    %c0_i32 = arith.constant 0 : i32
    %c0_i32_0 = arith.constant 0 : i32
    %c0_i32_1 = arith.constant 0 : i32
    return %c0_i32, %c0_i32_0 : i32, i32
  }
  func.func @transform_9(%arg0: i32) -> (i32, i32) {
    %c0_i32 = arith.constant 0 : i32
    %c0_i32_0 = arith.constant 0 : i32
    return %arg0, %c0_i32 : i32, i32
  }
}

</mosaic_0001>

<llo_original>
// kernel: tpu_custom_call.1
$region0: #{tpu_custom_call.1}
  #allocation0 [shape = 'u32[]', space=smem, size = 0x4, offset = 0x4, fixed_abs, tag = 'smem constant byte address 0x4 - core index']
  #allocation1 [shape = 'u32[72,128]{1,0:T(1,128)}', space=vmem, size = 0x9000, scoped, tag = 'internal scratch']
  %s0 = inlined_call_operand.vmem [shape: f32[256,8], index: 0, kind: input, shape index: {}]
  %s1 = inlined_call_operand.vmem [shape: f32[256,8], index: 1, kind: input, shape index: {}]
  %s2 = inlined_call_operand.vmem [shape: f32[8,32], index: 2, kind: input, shape index: {}]
  %s3 = inlined_call_operand.vmem [shape: f32[8,32], index: 3, kind: input, shape index: {}]
  %s4 = inlined_call_operand.vmem [shape: f32[1,32], index: 4, kind: input, shape index: {}]
  %s5 = inlined_call_operand.vmem [shape: f32[32,32], index: 5, kind: input, shape index: {}]
  %s6 = inlined_call_operand.vmem [shape: f32[1,32], index: 6, kind: input, shape index: {}]
  %s7 = inlined_call_operand.vmem [shape: f32[32,16], index: 7, kind: input, shape index: {}]
  %s8 = inlined_call_operand.vmem [shape: f32[1,16], index: 8, kind: input, shape index: {}]
  %s9 = inlined_call_operand.vmem [shape: f32[256,16], index: 9, kind: output, shape index: {}]
  %s10 = sld [smem:[#allocation0]]
  $region69: #{tpu_custom_call.1} parent=0
    _
  %s12 = ssub.s32 1, %s10
  %s13 = scalar_select 0, %s12, %s10
  loop: start=0, step=1, limit=4
  $region2: #{tpu_custom_call.1} parent=0 // loop_pre_header
    _
  $region3: #{tpu_custom_call.1} parent=0 // loop_header
    %s15 = sphi 0, %s19
    %p16 = scmp.ge.s32.totalorder %s15, 4
    %s25 = sphi 0, %s27
    %s28 = sphi 0, %s25
    %s29 = sphi 0, %s28
    %s45 = sphi 0, %s29
    %s51 = sphi 0, %s53
    %s54 = sphi 0, %s51
    %s55 = sphi 0, %s54
    %s71 = sphi 0, %s55
    %s75 = sphi 0, %s75
    %s77 = sphi 0, %s75
    %s78 = sphi 0, %s77
    %s92 = sphi 0, %s78
    %s96 = sphi 0, %s96
    %s98 = sphi 0, %s96
    %s99 = sphi 0, %s98
    %s113 = sphi 0, %s99
    %s117 = sphi 0, %s117
    %s119 = sphi 0, %s117
    %s120 = sphi 0, %s119
    %s134 = sphi 0, %s120
    %s138 = sphi 0, %s138
    %s140 = sphi 0, %s138
    %s141 = sphi 0, %s140
    %s155 = sphi 0, %s141
    %s159 = sphi 0, %s159
    %s161 = sphi 0, %s159
    %s162 = sphi 0, %s161
    %s176 = sphi 0, %s162
    %s180 = sphi 0, %s180
    %s182 = sphi 0, %s180
    %s183 = sphi 0, %s182
    %s197 = sphi 0, %s183
    %s201 = sphi 0, %s201
    %s203 = sphi 0, %s201
    %s204 = sphi 0, %s203
    %s218 = sphi 0, %s204
    %s224 = sphi 0, %s226
    %s227 = sphi 0, %s224
    %s228 = sphi 0, %s227
    %s244 = sphi 0, %s228
  $region4: #{tpu_custom_call.1} parent=0 // loop_header_branch
    %18 = sbr.rel (%p16) target = $region8
  $region5: #{tpu_custom_call.1} parent=0 // loop_body
    %s20 = ssub.s32 %s15, 1
    %s21 = ssub.s32 %s15, 2
    %s22 = sadd.s32 %s15, 1
    %s23 = ssub.s32 %s15, %s22
    %p24 = scmp.eq.s32.totalorder %s23, 0
    %s26 = sadd.s32 %s25, 1
    %s27 = scalar_select %p24, %s25, %s26
    %p30 = pneg %p24
    %p31 = scmp.eq.s32.totalorder %s15, 1
    %p32 = por %p30, %p31
    %p33 = scmp.ne.s32.totalorder %s25, %s28
    %p34 = scmp.eq.s32.totalorder %s15, 0
    %p35 = por %p33, %p34
    %p36 = scmp.ne.s32.totalorder %s25, %s28
    %p37 = scmp.eq.s32.totalorder %s20, 1
    %p38 = por %p36, %p37
    %p39 = scmp.ne.s32.totalorder %s28, %s29
    %p40 = scmp.eq.s32.totalorder %s20, 0
    %p41 = por %p39, %p40
    %p42 = scmp.ne.s32.totalorder %s28, %s29
    %p43 = scmp.eq.s32.totalorder %s21, 1
    %p44 = por %p42, %p43
    %p46 = scmp.ne.s32.totalorder %s29, %s45
    %p47 = scmp.eq.s32.totalorder %s21, 0
    %p48 = por %p46, %p47
    %s49 = ssub.s32 %s15, %s22
    %p50 = scmp.eq.s32.totalorder %s49, 0
    %s52 = sadd.s32 %s51, 1
    %s53 = scalar_select %p50, %s51, %s52
    %p56 = pneg %p50
    %p57 = scmp.eq.s32.totalorder %s15, 1
    %p58 = por %p56, %p57
    %p59 = scmp.ne.s32.totalorder %s51, %s54
    %p60 = scmp.eq.s32.totalorder %s15, 0
    %p61 = por %p59, %p60
    %p62 = scmp.ne.s32.totalorder %s51, %s54
    %p63 = scmp.eq.s32.totalorder %s20, 1
    %p64 = por %p62, %p63
    %p65 = scmp.ne.s32.totalorder %s54, %s55
    %p66 = scmp.eq.s32.totalorder %s20, 0
    %p67 = por %p65, %p66
    %p68 = scmp.ne.s32.totalorder %s54, %s55
    %p69 = scmp.eq.s32.totalorder %s21, 1
    %p70 = por %p68, %p69
    %p72 = scmp.ne.s32.totalorder %s55, %s71
    %p73 = scmp.eq.s32.totalorder %s21, 0
    %p74 = por %p72, %p73
    %s76 = sadd.s32 %s75, 1
    %p79 = scmp.eq.s32.totalorder %s15, 1
    %p80 = scmp.ne.s32.totalorder %s75, %s77
    %p81 = scmp.eq.s32.totalorder %s15, 0
    %p82 = por %p80, %p81
    %p83 = scmp.ne.s32.totalorder %s75, %s77
    %p84 = scmp.eq.s32.totalorder %s20, 1
    %p85 = por %p83, %p84
    %p86 = scmp.ne.s32.totalorder %s77, %s78
    %p87 = scmp.eq.s32.totalorder %s20, 0
    %p88 = por %p86, %p87
    %p89 = scmp.ne.s32.totalorder %s77, %s78
    %p90 = scmp.eq.s32.totalorder %s21, 1
    %p91 = por %p89, %p90
    %p93 = scmp.ne.s32.totalorder %s78, %s92
    %p94 = scmp.eq.s32.totalorder %s21, 0
    %p95 = por %p93, %p94
    %s97 = sadd.s32 %s96, 1
    %p100 = scmp.eq.s32.totalorder %s15, 1
    %p101 = scmp.ne.s32.totalorder %s96, %s98
    %p102 = scmp.eq.s32.totalorder %s15, 0
    %p103 = por %p101, %p102
    %p104 = scmp.ne.s32.totalorder %s96, %s98
    %p105 = scmp.eq.s32.totalorder %s20, 1
    %p106 = por %p104, %p105
    %p107 = scmp.ne.s32.totalorder %s98, %s99
    %p108 = scmp.eq.s32.totalorder %s20, 0
    %p109 = por %p107, %p108
    %p110 = scmp.ne.s32.totalorder %s98, %s99
    %p111 = scmp.eq.s32.totalorder %s21, 1
    %p112 = por %p110, %p111
    %p114 = scmp.ne.s32.totalorder %s99, %s113
    %p115 = scmp.eq.s32.totalorder %s21, 0
    %p116 = por %p114, %p115
    %s118 = sadd.s32 %s117, 1
    %p121 = scmp.eq.s32.totalorder %s15, 1
    %p122 = scmp.ne.s32.totalorder %s117, %s119
    %p123 = scmp.eq.s32.totalorder %s15, 0
    %p124 = por %p122, %p123
    %p125 = scmp.ne.s32.totalorder %s117, %s119
    %p126 = scmp.eq.s32.totalorder %s20, 1
    %p127 = por %p125, %p126
    %p128 = scmp.ne.s32.totalorder %s119, %s120
    %p129 = scmp.eq.s32.totalorder %s20, 0
    %p130 = por %p128, %p129
    %p131 = scmp.ne.s32.totalorder %s119, %s120
    %p132 = scmp.eq.s32.totalorder %s21, 1
    %p133 = por %p131, %p132
    %p135 = scmp.ne.s32.totalorder %s120, %s134
    %p136 = scmp.eq.s32.totalorder %s21, 0
    %p137 = por %p135, %p136
    %s139 = sadd.s32 %s138, 1
    %p142 = scmp.eq.s32.totalorder %s15, 1
    %p143 = scmp.ne.s32.totalorder %s138, %s140
    %p144 = scmp.eq.s32.totalorder %s15, 0
    %p145 = por %p143, %p144
    %p146 = scmp.ne.s32.totalorder %s138, %s140
    %p147 = scmp.eq.s32.totalorder %s20, 1
    %p148 = por %p146, %p147
    %p149 = scmp.ne.s32.totalorder %s140, %s141
    %p150 = scmp.eq.s32.totalorder %s20, 0
    %p151 = por %p149, %p150
    %p152 = scmp.ne.s32.totalorder %s140, %s141
    %p153 = scmp.eq.s32.totalorder %s21, 1
    %p154 = por %p152, %p153
    %p156 = scmp.ne.s32.totalorder %s141, %s155
    %p157 = scmp.eq.s32.totalorder %s21, 0
    %p158 = por %p156, %p157
    %s160 = sadd.s32 %s159, 1
    %p163 = scmp.eq.s32.totalorder %s15, 1
    %p164 = scmp.ne.s32.totalorder %s159, %s161
    %p165 = scmp.eq.s32.totalorder %s15, 0
    %p166 = por %p164, %p165
    %p167 = scmp.ne.s32.totalorder %s159, %s161
    %p168 = scmp.eq.s32.totalorder %s20, 1
    %p169 = por %p167, %p168
    %p170 = scmp.ne.s32.totalorder %s161, %s162
    %p171 = scmp.eq.s32.totalorder %s20, 0
    %p172 = por %p170, %p171
    %p173 = scmp.ne.s32.totalorder %s161, %s162
    %p174 = scmp.eq.s32.totalorder %s21, 1
    %p175 = por %p173, %p174
    %p177 = scmp.ne.s32.totalorder %s162, %s176
    %p178 = scmp.eq.s32.totalorder %s21, 0
    %p179 = por %p177, %p178
    %s181 = sadd.s32 %s180, 1
    %p184 = scmp.eq.s32.totalorder %s15, 1
    %p185 = scmp.ne.s32.totalorder %s180, %s182
    %p186 = scmp.eq.s32.totalorder %s15, 0
    %p187 = por %p185, %p186
    %p188 = scmp.ne.s32.totalorder %s180, %s182
    %p189 = scmp.eq.s32.totalorder %s20, 1
    %p190 = por %p188, %p189
    %p191 = scmp.ne.s32.totalorder %s182, %s183
    %p192 = scmp.eq.s32.totalorder %s20, 0
    %p193 = por %p191, %p192
    %p194 = scmp.ne.s32.totalorder %s182, %s183
    %p195 = scmp.eq.s32.totalorder %s21, 1
    %p196 = por %p194, %p195
    %p198 = scmp.ne.s32.totalorder %s183, %s197
    %p199 = scmp.eq.s32.totalorder %s21, 0
    %p200 = por %p198, %p199
    %s202 = sadd.s32 %s201, 1
    %p205 = scmp.eq.s32.totalorder %s15, 1
    %p206 = scmp.ne.s32.totalorder %s201, %s203
    %p207 = scmp.eq.s32.totalorder %s15, 0
    %p208 = por %p206, %p207
    %p209 = scmp.ne.s32.totalorder %s201, %s203
    %p210 = scmp.eq.s32.totalorder %s20, 1
    %p211 = por %p209, %p210
    %p212 = scmp.ne.s32.totalorder %s203, %s204
    %p213 = scmp.eq.s32.totalorder %s20, 0
    %p214 = por %p212, %p213
    %p215 = scmp.ne.s32.totalorder %s203, %s204
    %p216 = scmp.eq.s32.totalorder %s21, 1
    %p217 = por %p215, %p216
    %p219 = scmp.ne.s32.totalorder %s204, %s218
    %p220 = scmp.eq.s32.totalorder %s21, 0
    %p221 = por %p219, %p220
    %s222 = ssub.s32 %s15, %s22
    %p223 = scmp.eq.s32.totalorder %s222, 0
    %s225 = sadd.s32 %s224, 1
    %s226 = scalar_select %p223, %s224, %s225
    %p229 = pneg %p223
    %p230 = scmp.eq.s32.totalorder %s15, 1
    %p231 = por %p229, %p230
    %p232 = scmp.ne.s32.totalorder %s224, %s227
    %p233 = scmp.eq.s32.totalorder %s15, 0
    %p234 = por %p232, %p233
    %p235 = scmp.ne.s32.totalorder %s224, %s227
    %p236 = scmp.eq.s32.totalorder %s20, 1
    %p237 = por %p235, %p236
    %p238 = scmp.ne.s32.totalorder %s227, %s228
    %p239 = scmp.eq.s32.totalorder %s20, 0
    %p240 = por %p238, %p239
    %p241 = scmp.ne.s32.totalorder %s227, %s228
    %p242 = scmp.eq.s32.totalorder %s21, 1
    %p243 = por %p241, %p242
    %p245 = scmp.ne.s32.totalorder %s228, %s244
    %p246 = scmp.eq.s32.totalorder %s21, 0
    %p247 = por %p245, %p246
    %p248 = scmp.le.s32.totalorder 1, %s15
    %p249 = scmp.lt.s32.totalorder %s15, 3
    %p250 = pnand %p248, %p249
    %p251 = pneg %p250
    // Predicated region
    $region9: #{tpu_custom_call.1} parent=5 // pred_check
      _
    $region10: #{tpu_custom_call.1} parent=5 // pred_check_branch
      %253 = sbr.rel (%p250) target = $region12
    $region11: #{tpu_custom_call.1} parent=5 // pred_region
      %s254 = ssub.s32 %s15, 1
      // Predicated region
      $region13: #{tpu_custom_call.1} parent=11 // pred_check
        %p255 = pneg %p88
      $region14: #{tpu_custom_call.1} parent=11 // pred_check_branch
        %257 = sbr.rel (%p255) target = $region16
      $region15: #{tpu_custom_call.1} parent=11 // pred_region
        _
      $region16: #{tpu_custom_call.1} parent=11 // pred_fallthru
        _
      // Predicated region
      $region17: #{tpu_custom_call.1} parent=11 // pred_check
        %p258 = pneg %p109
      $region18: #{tpu_custom_call.1} parent=11 // pred_check_branch
        %260 = sbr.rel (%p258) target = $region20
      $region19: #{tpu_custom_call.1} parent=11 // pred_region
        _
      $region20: #{tpu_custom_call.1} parent=11 // pred_fallthru
        _
      // Predicated region
      $region21: #{tpu_custom_call.1} parent=11 // pred_check
        %p261 = pneg %p130
      $region22: #{tpu_custom_call.1} parent=11 // pred_check_branch
        %263 = sbr.rel (%p261) target = $region24
      $region23: #{tpu_custom_call.1} parent=11 // pred_region
        _
      $region24: #{tpu_custom_call.1} parent=11 // pred_fallthru
        _
      // Predicated region
      $region25: #{tpu_custom_call.1} parent=11 // pred_check
        %p264 = pneg %p151
      $region26: #{tpu_custom_call.1} parent=11 // pred_check_branch
        %266 = sbr.rel (%p264) target = $region28
      $region27: #{tpu_custom_call.1} parent=11 // pred_region
        _
      $region28: #{tpu_custom_call.1} parent=11 // pred_fallthru
        _
      // Predicated region
      $region29: #{tpu_custom_call.1} parent=11 // pred_check
        %p267 = pneg %p172
      $region30: #{tpu_custom_call.1} parent=11 // pred_check_branch
        %269 = sbr.rel (%p267) target = $region32
      $region31: #{tpu_custom_call.1} parent=11 // pred_region
        _
      $region32: #{tpu_custom_call.1} parent=11 // pred_fallthru
        _
      // Predicated region
      $region33: #{tpu_custom_call.1} parent=11 // pred_check
        %p270 = pneg %p193
      $region34: #{tpu_custom_call.1} parent=11 // pred_check_branch
        %272 = sbr.rel (%p270) target = $region36
      $region35: #{tpu_custom_call.1} parent=11 // pred_region
        _
      $region36: #{tpu_custom_call.1} parent=11 // pred_fallthru
        _
      // Predicated region
      $region37: #{tpu_custom_call.1} parent=11 // pred_check
        %p273 = pneg %p214
      $region38: #{tpu_custom_call.1} parent=11 // pred_check_branch
        %275 = sbr.rel (%p273) target = $region40
      $region39: #{tpu_custom_call.1} parent=11 // pred_region
        _
      $region40: #{tpu_custom_call.1} parent=11 // pred_fallthru
        _
    $region12: #{tpu_custom_call.1} parent=5 // pred_fallthru
      _
    %p276 = scmp.lt.s32.totalorder %s15, 2
    // Predicated region
    $region41: #{tpu_custom_call.1} parent=5 // pred_check
      %p277 = pneg %p276
    $region42: #{tpu_custom_call.1} parent=5 // pred_check_branch
      %279 = sbr.rel (%p277) target = $region44
    $region43: #{tpu_custom_call.1} parent=5 // pred_region
      // Predicated region
      $region45: #{tpu_custom_call.1} parent=43 // pred_check
        %p280 = pneg %p35
      $region46: #{tpu_custom_call.1} parent=43 // pred_check_branch
        %282 = sbr.rel (%p280) target = $region48
      $region47: #{tpu_custom_call.1} parent=43 // pred_region
        %s283 = smul.u32 16, %s15
        %p284 = scmp.lt.s32.totalorder %s283, 31
        %s285 = scalar_select %p284, %s283, 31
        %s286 = smul.addr %s285, 8
        %s287 = scalar_lea.vmem %s0, %s286
        %s288 = smul.u32 16, %s15
      $region48: #{tpu_custom_call.1} parent=43 // pred_fallthru
        _
      // Predicated region
      $region49: #{tpu_custom_call.1} parent=43 // pred_check
        %p289 = pneg %p61
      $region50: #{tpu_custom_call.1} parent=43 // pred_check_branch
        %291 = sbr.rel (%p289) target = $region52
      $region51: #{tpu_custom_call.1} parent=43 // pred_region
        %s292 = smul.u32 16, %s15
        %p293 = scmp.lt.s32.totalorder %s292, 31
        %s294 = scalar_select %p293, %s292, 31
        %s295 = smul.addr %s294, 8
        %s296 = scalar_lea.vmem %s1, %s295
        %s297 = smul.u32 16, %s15
      $region52: #{tpu_custom_call.1} parent=43 // pred_fallthru
        _
    $region44: #{tpu_custom_call.1} parent=5 // pred_fallthru
      _
    %p298 = scmp.le.s32.totalorder 1, %s15
    %p299 = scmp.lt.s32.totalorder %s15, 3
    %p300 = pnand %p298, %p299
    %p301 = pneg %p300
    // Predicated region
    $region53: #{tpu_custom_call.1} parent=5 // pred_check
      _
    $region54: #{tpu_custom_call.1} parent=5 // pred_check_branch
      %303 = sbr.rel (%p300) target = $region56
    $region55: #{tpu_custom_call.1} parent=5 // pred_region
      %s304 = ssub.s32 %s15, 1
      %s305 = smul.u32 16, %s20
      %p306 = scmp.lt.s32.totalorder %s305, 31
      %s307 = scalar_select %p306, %s305, 31
      %s308 = smul.addr %s307, 8
      %s309 = scalar_lea.vmem %s0, %s308
      %p310 = pneg %p41
      %p311 = pneg %p38
      %s312 = smul.u32 16, %s20
      %p313 = scmp.lt.s32.totalorder %s312, 31
      %s314 = scalar_select %p313, %s312, 31
      %s315 = smul.addr %s314, 8
      %s316 = scalar_lea.vmem %s1, %s315
      %p317 = pneg %p67
      %p318 = pneg %p64
      %p319 = pneg %p88
      %p320 = pneg %p85
      %p321 = pneg %p109
      %p322 = pneg %p106
      %p323 = pneg %p130
      %p324 = pneg %p127
      %p325 = pneg %p151
      %p326 = pneg %p148
      %p327 = pneg %p172
      %p328 = pneg %p169
      %p329 = pneg %p193
      %p330 = pneg %p190
      %p331 = pneg %p214
      %p332 = pneg %p211
      %p333 = pneg %p240
      %p334 = pneg %p237
      %s335 = smul.u32 16, %s20
      %p336 = scmp.lt.s32.totalorder %s335, 31
      %s337 = scalar_select %p336, %s335, 31
      %s338 = smul.addr %s337, 8
      %s339 = scalar_lea.vmem %s9, %s338
      %s340 = smul.u32 16, %s20
      %p341 = scmp.lt.s32.totalorder %s340, 31
      %s342 = scalar_select %p341, %s340, 31
      %s343 = smul.addr %s342, 8
      %s344 = scalar_lea.vmem %s0, %s343
      %s345 = smul.u32 16, %s20
      %s346 = smul.u32 16, %s20
      %p347 = scmp.lt.s32.totalorder %s346, 31
      %s348 = scalar_select %p347, %s346, 31
      %s349 = smul.addr %s348, 8
      %s350 = scalar_lea.vmem %s1, %s349
      %s351 = smul.u32 16, %s20
      %s352 = smul.u32 16, %s20
      %p353 = scmp.lt.s32.totalorder %s352, 31
      %s354 = scalar_select %p353, %s352, 31
      %s355 = smul.addr %s354, 8
      %s356 = scalar_lea.vmem %s9, %s355
      %s357 = smul.u32 16, %s20
      %v358 = vld [vmem:[%s344] sm:$0xff]
      %v359 = vld [vmem:[%s344 + $0x8] sm:$0xff]
      %v360 = vld [vmem:[%s344 + $0x10] sm:$0xff]
      %v361 = vld [vmem:[%s344 + $0x18] sm:$0xff]
      %v362 = vld [vmem:[%s344 + $0x20] sm:$0xff]
      %v363 = vld [vmem:[%s344 + $0x28] sm:$0xff]
      %v364 = vld [vmem:[%s344 + $0x30] sm:$0xff]
      %v365 = vld [vmem:[%s344 + $0x38] sm:$0xff]
      %v366 = vld [vmem:[%s344 + $0x40] sm:$0xff]
      %v367 = vld [vmem:[%s344 + $0x48] sm:$0xff]
      %v368 = vld [vmem:[%s344 + $0x50] sm:$0xff]
      %v369 = vld [vmem:[%s344 + $0x58] sm:$0xff]
      %v370 = vld [vmem:[%s344 + $0x60] sm:$0xff]
      %v371 = vld [vmem:[%s344 + $0x68] sm:$0xff]
      %v372 = vld [vmem:[%s344 + $0x70] sm:$0xff]
      %v373 = vld [vmem:[%s344 + $0x78] sm:$0xff]
      %v374 = vld [vmem:[%s2] sm:$0xff]
      %v375 = vld [vmem:[%s350] sm:$0xff]
      %v376 = vld [vmem:[%s350 + $0x8] sm:$0xff]
      %v377 = vld [vmem:[%s350 + $0x10] sm:$0xff]
      %v378 = vld [vmem:[%s350 + $0x18] sm:$0xff]
      %v379 = vld [vmem:[%s350 + $0x20] sm:$0xff]
      %v380 = vld [vmem:[%s350 + $0x28] sm:$0xff]
      %v381 = vld [vmem:[%s350 + $0x30] sm:$0xff]
      %v382 = vld [vmem:[%s350 + $0x38] sm:$0xff]
      %v383 = vld [vmem:[%s350 + $0x40] sm:$0xff]
      %v384 = vld [vmem:[%s350 + $0x48] sm:$0xff]
      %v385 = vld [vmem:[%s350 + $0x50] sm:$0xff]
      %v386 = vld [vmem:[%s350 + $0x58] sm:$0xff]
      %v387 = vld [vmem:[%s350 + $0x60] sm:$0xff]
      %v388 = vld [vmem:[%s350 + $0x68] sm:$0xff]
      %v389 = vld [vmem:[%s350 + $0x70] sm:$0xff]
      %v390 = vld [vmem:[%s350 + $0x78] sm:$0xff]
      %v391 = vld [vmem:[%s3] sm:$0xff]
      %vm392 = vcmask 64512
      %v394 = vsel %vm392, %v375, 0
      %v397 = vsel %vm392, %v376, 0
      %v400 = vsel %vm392, %v377, 0
      %v403 = vsel %vm392, %v378, 0
      %v406 = vsel %vm392, %v379, 0
      %v409 = vsel %vm392, %v380, 0
      %v412 = vsel %vm392, %v381, 0
      %v415 = vsel %vm392, %v382, 0
      %v418 = vsel %vm392, %v383, 0
      %v421 = vsel %vm392, %v384, 0
      %v424 = vsel %vm392, %v385, 0
      %v427 = vsel %vm392, %v386, 0
      %v430 = vsel %vm392, %v387, 0
      %v433 = vsel %vm392, %v388, 0
      %v436 = vsel %vm392, %v389, 0
      %v439 = vsel %vm392, %v390, 0
      %441 = vmatpush.msra.mxu0 0.0
      %442 = vmatpush.msra.mxu0 0.0
      %443 = vmatpush.msra.mxu0 0.0
      %444 = vmatpush.msra.mxu0 0.0
      %445 = vmatpush.msra.mxu0 0.0
      %446 = vmatpush.msra.mxu0 0.0
      %447 = vmatpush.msra.mxu0 0.0
      %448 = vmatpush.msra.mxu0 0.0
      %449 = vmatpush.msra.mxu0 0.0
      %450 = vmatpush.msra.mxu0 0.0
      %451 = vmatpush.msra.mxu0 0.0
      %452 = vmatpush.msra.mxu0 0.0
      %453 = vmatpush.msra.mxu0 0.0
      %454 = vmatpush.msra.mxu0 0.0
      %455 = vmatpush.msra.mxu0 0.0
      %456 = vmatpush.msra.mxu0 %v391
      %457 = vmatmul.f32.gmra.mxu0 %v394
      %v458 = vpop.f32.mrf.mxu0
      %v459 = vadd.f32 0.0, %v458
      %460 = vmatmul.f32.gmra.mxu0 %v397
      %v461 = vpop.f32.mrf.mxu0
      %v462 = vadd.f32 0.0, %v461
      %463 = vmatmul.f32.gmra.mxu0 %v400
      %v464 = vpop.f32.mrf.mxu0
      %v465 = vadd.f32 0.0, %v464
      %466 = vmatmul.f32.gmra.mxu0 %v403
      %v467 = vpop.f32.mrf.mxu0
      %v468 = vadd.f32 0.0, %v467
      %469 = vmatmul.f32.gmra.mxu0 %v406
      %v470 = vpop.f32.mrf.mxu0
      %v471 = vadd.f32 0.0, %v470
      %472 = vmatmul.f32.gmra.mxu0 %v409
      %v473 = vpop.f32.mrf.mxu0
      %v474 = vadd.f32 0.0, %v473
      %475 = vmatmul.f32.gmra.mxu0 %v412
      %v476 = vpop.f32.mrf.mxu0
      %v477 = vadd.f32 0.0, %v476
      %478 = vmatmul.f32.gmra.mxu0 %v415
      %v479 = vpop.f32.mrf.mxu0
      %v480 = vadd.f32 0.0, %v479
      %481 = vmatmul.f32.gmra.mxu0 %v418
      %v482 = vpop.f32.mrf.mxu0
      %v483 = vadd.f32 0.0, %v482
      %484 = vmatmul.f32.gmra.mxu0 %v421
      %v485 = vpop.f32.mrf.mxu0
      %v486 = vadd.f32 0.0, %v485
      %487 = vmatmul.f32.gmra.mxu0 %v424
      %v488 = vpop.f32.mrf.mxu0
      %v489 = vadd.f32 0.0, %v488
      %490 = vmatmul.f32.gmra.mxu0 %v427
      %v491 = vpop.f32.mrf.mxu0
      %v492 = vadd.f32 0.0, %v491
      %493 = vmatmul.f32.gmra.mxu0 %v430
      %v494 = vpop.f32.mrf.mxu0
      %v495 = vadd.f32 0.0, %v494
      %496 = vmatmul.f32.gmra.mxu0 %v433
      %v497 = vpop.f32.mrf.mxu0
      %v498 = vadd.f32 0.0, %v497
      %499 = vmatmul.f32.gmra.mxu0 %v436
      %v500 = vpop.f32.mrf.mxu0
      %v501 = vadd.f32 0.0, %v500
      %502 = vmatmul.f32.gmra.mxu0 %v439
      %v503 = vpop.f32.mrf.mxu0
      %v504 = vadd.f32 0.0, %v503
      %505 = vdwg.mxu0
      %v507 = vsel %vm392, %v358, 0
      %v510 = vsel %vm392, %v359, 0
      %v513 = vsel %vm392, %v360, 0
      %v516 = vsel %vm392, %v361, 0
      %v519 = vsel %vm392, %v362, 0
      %v522 = vsel %vm392, %v363, 0
      %v525 = vsel %vm392, %v364, 0
      %v528 = vsel %vm392, %v365, 0
      %v531 = vsel %vm392, %v366, 0
      %v534 = vsel %vm392, %v367, 0
      %v537 = vsel %vm392, %v368, 0
      %v540 = vsel %vm392, %v369, 0
      %v543 = vsel %vm392, %v370, 0
      %v546 = vsel %vm392, %v371, 0
      %v549 = vsel %vm392, %v372, 0
      %v552 = vsel %vm392, %v373, 0
      %554 = vmatpush.msra.mxu0 0.0
      %555 = vmatpush.msra.mxu0 0.0
      %556 = vmatpush.msra.mxu0 0.0
      %557 = vmatpush.msra.mxu0 0.0
      %558 = vmatpush.msra.mxu0 0.0
      %559 = vmatpush.msra.mxu0 0.0
      %560 = vmatpush.msra.mxu0 0.0
      %561 = vmatpush.msra.mxu0 0.0
      %562 = vmatpush.msra.mxu0 0.0
      %563 = vmatpush.msra.mxu0 0.0
      %564 = vmatpush.msra.mxu0 0.0
      %565 = vmatpush.msra.mxu0 0.0
      %566 = vmatpush.msra.mxu0 0.0
      %567 = vmatpush.msra.mxu0 0.0
      %568 = vmatpush.msra.mxu0 0.0
      %569 = vmatpush.msra.mxu0 %v374
      %570 = vmatmul.f32.gmra.mxu0 %v507
      %v571 = vpop.f32.mrf.mxu0
      %v572 = vadd.f32 %v459, %v571
      %573 = vmatmul.f32.gmra.mxu0 %v510
      %v574 = vpop.f32.mrf.mxu0
      %v575 = vadd.f32 %v462, %v574
      %576 = vmatmul.f32.gmra.mxu0 %v513
      %v577 = vpop.f32.mrf.mxu0
      %v578 = vadd.f32 %v465, %v577
      %579 = vmatmul.f32.gmra.mxu0 %v516
      %v580 = vpop.f32.mrf.mxu0
      %v581 = vadd.f32 %v468, %v580
      %582 = vmatmul.f32.gmra.mxu0 %v519
      %v583 = vpop.f32.mrf.mxu0
      %v584 = vadd.f32 %v471, %v583
      %585 = vmatmul.f32.gmra.mxu0 %v522
      %v586 = vpop.f32.mrf.mxu0
      %v587 = vadd.f32 %v474, %v586
      %588 = vmatmul.f32.gmra.mxu0 %v525
      %v589 = vpop.f32.mrf.mxu0
      %v590 = vadd.f32 %v477, %v589
      %591 = vmatmul.f32.gmra.mxu0 %v528
      %v592 = vpop.f32.mrf.mxu0
      %v593 = vadd.f32 %v480, %v592
      %594 = vmatmul.f32.gmra.mxu0 %v531
      %v595 = vpop.f32.mrf.mxu0
      %v596 = vadd.f32 %v483, %v595
      %597 = vmatmul.f32.gmra.mxu0 %v534
      %v598 = vpop.f32.mrf.mxu0
      %v599 = vadd.f32 %v486, %v598
      %600 = vmatmul.f32.gmra.mxu0 %v537
      %v601 = vpop.f32.mrf.mxu0
      %v602 = vadd.f32 %v489, %v601
      %603 = vmatmul.f32.gmra.mxu0 %v540
      %v604 = vpop.f32.mrf.mxu0
      %v605 = vadd.f32 %v492, %v604
      %606 = vmatmul.f32.gmra.mxu0 %v543
      %v607 = vpop.f32.mrf.mxu0
      %v608 = vadd.f32 %v495, %v607
      %609 = vmatmul.f32.gmra.mxu0 %v546
      %v610 = vpop.f32.mrf.mxu0
      %v611 = vadd.f32 %v498, %v610
      %612 = vmatmul.f32.gmra.mxu0 %v549
      %v613 = vpop.f32.mrf.mxu0
      %v614 = vadd.f32 %v501, %v613
      %615 = vmatmul.f32.gmra.mxu0 %v552
      %v616 = vpop.f32.mrf.mxu0
      %v617 = vadd.f32 %v504, %v616
      %618 = vdwg.mxu0
      %v619 = vld [vmem:[%s4] sm:$0x1]
      %v621 = vperm.slane %v619, 0
      %v623 = vadd.f32 %v572, %v621
      %v624 = vadd.f32 %v575, %v621
      %v625 = vadd.f32 %v578, %v621
      %v626 = vadd.f32 %v581, %v621
      %v627 = vadd.f32 %v584, %v621
      %v628 = vadd.f32 %v587, %v621
      %v629 = vadd.f32 %v590, %v621
      %v630 = vadd.f32 %v593, %v621
      %v631 = vadd.f32 %v596, %v621
      %v632 = vadd.f32 %v599, %v621
      %v633 = vadd.f32 %v602, %v621
      %v634 = vadd.f32 %v605, %v621
      %v635 = vadd.f32 %v608, %v621
      %v636 = vadd.f32 %v611, %v621
      %v637 = vadd.f32 %v614, %v621
      %v638 = vadd.f32 %v617, %v621
      %v639 = vmax.f32 %v623, 0.0
      %v640 = vmax.f32 %v624, 0.0
      %v641 = vmax.f32 %v625, 0.0
      %v642 = vmax.f32 %v626, 0.0
      %v643 = vmax.f32 %v627, 0.0
      %v644 = vmax.f32 %v628, 0.0
      %v645 = vmax.f32 %v629, 0.0
      %v646 = vmax.f32 %v630, 0.0
      %v647 = vmax.f32 %v631, 0.0
      %v648 = vmax.f32 %v632, 0.0
      %v649 = vmax.f32 %v633, 0.0
      %v650 = vmax.f32 %v634, 0.0
      %v651 = vmax.f32 %v635, 0.0
      %v652 = vmax.f32 %v636, 0.0
      %v653 = vmax.f32 %v637, 0.0
      %v654 = vmax.f32 %v638, 0.0
      %v655 = vld [vmem:[%s5] sm:$0xff]
      %v656 = vld [vmem:[%s5 + $0x8] sm:$0xff]
      %v657 = vld [vmem:[%s5 + $0x10] sm:$0xff]
      %v658 = vld [vmem:[%s5 + $0x18] sm:$0xff]
      %v659 = vld [vmem:[%s6] sm:$0x1]
      %v661 = vperm.slane %v659, 0
      %vm663 = vcmask 261120
      %v665 = vsel %vm663, %v639, 0
      %v668 = vsel %vm663, %v640, 0
      %v671 = vsel %vm663, %v641, 0
      %v674 = vsel %vm663, %v642, 0
      %v677 = vsel %vm663, %v643, 0
      %v680 = vsel %vm663, %v644, 0
      %v683 = vsel %vm663, %v645, 0
      %v686 = vsel %vm663, %v646, 0
      %v689 = vsel %vm663, %v647, 0
      %v692 = vsel %vm663, %v648, 0
      %v695 = vsel %vm663, %v649, 0
      %v698 = vsel %vm663, %v650, 0
      %v701 = vsel %vm663, %v651, 0
      %v704 = vsel %vm663, %v652, 0
      %v707 = vsel %vm663, %v653, 0
      %v710 = vsel %vm663, %v654, 0
      %712 = vmatpush.msra.mxu0 0.0
      %713 = vmatpush.msra.mxu0 0.0
      %714 = vmatpush.msra.mxu0 0.0
      %715 = vmatpush.msra.mxu0 0.0
      %716 = vmatpush.msra.mxu0 0.0
      %717 = vmatpush.msra.mxu0 0.0
      %718 = vmatpush.msra.mxu0 0.0
      %719 = vmatpush.msra.mxu0 0.0
      %720 = vmatpush.msra.mxu0 0.0
      %721 = vmatpush.msra.mxu0 0.0
      %722 = vmatpush.msra.mxu0 0.0
      %723 = vmatpush.msra.mxu0 0.0
      %724 = vmatpush.msra.mxu0 %v658
      %725 = vmatpush.msra.mxu0 %v657
      %726 = vmatpush.msra.mxu0 %v656
      %727 = vmatpush.msra.mxu0 %v655
      %728 = vmatmul.f32.gmra.mxu0 %v665
      %v729 = vpop.f32.mrf.mxu0
      %v730 = vadd.f32 %v661, %v729
      %731 = vmatmul.f32.gmra.mxu0 %v668
      %v732 = vpop.f32.mrf.mxu0
      %v733 = vadd.f32 %v661, %v732
      %734 = vmatmul.f32.gmra.mxu0 %v671
      %v735 = vpop.f32.mrf.mxu0
      %v736 = vadd.f32 %v661, %v735
      %737 = vmatmul.f32.gmra.mxu0 %v674
      %v738 = vpop.f32.mrf.mxu0
      %v739 = vadd.f32 %v661, %v738
      %740 = vmatmul.f32.gmra.mxu0 %v677
      %v741 = vpop.f32.mrf.mxu0
      %v742 = vadd.f32 %v661, %v741
      %743 = vmatmul.f32.gmra.mxu0 %v680
      %v744 = vpop.f32.mrf.mxu0
      %v745 = vadd.f32 %v661, %v744
      %746 = vmatmul.f32.gmra.mxu0 %v683
      %v747 = vpop.f32.mrf.mxu0
      %v748 = vadd.f32 %v661, %v747
      %749 = vmatmul.f32.gmra.mxu0 %v686
      %v750 = vpop.f32.mrf.mxu0
      %v751 = vadd.f32 %v661, %v750
      %752 = vmatmul.f32.gmra.mxu0 %v689
      %v753 = vpop.f32.mrf.mxu0
      %v754 = vadd.f32 %v661, %v753
      %755 = vmatmul.f32.gmra.mxu0 %v692
      %v756 = vpop.f32.mrf.mxu0
      %v757 = vadd.f32 %v661, %v756
      %758 = vmatmul.f32.gmra.mxu0 %v695
      %v759 = vpop.f32.mrf.mxu0
      %v760 = vadd.f32 %v661, %v759
      %761 = vmatmul.f32.gmra.mxu0 %v698
      %v762 = vpop.f32.mrf.mxu0
      %v763 = vadd.f32 %v661, %v762
      %764 = vmatmul.f32.gmra.mxu0 %v701
      %v765 = vpop.f32.mrf.mxu0
      %v766 = vadd.f32 %v661, %v765
      %767 = vmatmul.f32.gmra.mxu0 %v704
      %v768 = vpop.f32.mrf.mxu0
      %v769 = vadd.f32 %v661, %v768
      %770 = vmatmul.f32.gmra.mxu0 %v707
      %v771 = vpop.f32.mrf.mxu0
      %v772 = vadd.f32 %v661, %v771
      %773 = vmatmul.f32.gmra.mxu0 %v710
      %v774 = vpop.f32.mrf.mxu0
      %v775 = vadd.f32 %v661, %v774
      %776 = vdwg.mxu0
      %v777 = vmax.f32 %v730, 0.0
      %v778 = vmax.f32 %v733, 0.0
      %v779 = vmax.f32 %v736, 0.0
      %v780 = vmax.f32 %v739, 0.0
      %v781 = vmax.f32 %v742, 0.0
      %v782 = vmax.f32 %v745, 0.0
      %v783 = vmax.f32 %v748, 0.0
      %v784 = vmax.f32 %v751, 0.0
      %v785 = vmax.f32 %v754, 0.0
      %v786 = vmax.f32 %v757, 0.0
      %v787 = vmax.f32 %v760, 0.0
      %v788 = vmax.f32 %v763, 0.0
      %v789 = vmax.f32 %v766, 0.0
      %v790 = vmax.f32 %v769, 0.0
      %v791 = vmax.f32 %v772, 0.0
      %v792 = vmax.f32 %v775, 0.0
      %v793 = vld [vmem:[%s7] sm:$0xff]
      %v794 = vld [vmem:[%s7 + $0x8] sm:$0xff]
      %v795 = vld [vmem:[%s7 + $0x10] sm:$0xff]
      %v796 = vld [vmem:[%s7 + $0x18] sm:$0xff]
      %v797 = vld [vmem:[%s8] sm:$0x1]
      %v799 = vperm.slane %v797, 0
      %v802 = vsel %vm663, %v777, 0
      %v805 = vsel %vm663, %v778, 0
      %v808 = vsel %vm663, %v779, 0
      %v811 = vsel %vm663, %v780, 0
      %v814 = vsel %vm663, %v781, 0
      %v817 = vsel %vm663, %v782, 0
      %v820 = vsel %vm663, %v783, 0
      %v823 = vsel %vm663, %v784, 0
      %v826 = vsel %vm663, %v785, 0
      %v829 = vsel %vm663, %v786, 0
      %v832 = vsel %vm663, %v787, 0
      %v835 = vsel %vm663, %v788, 0
      %v838 = vsel %vm663, %v789, 0
      %v841 = vsel %vm663, %v790, 0
      %v844 = vsel %vm663, %v791, 0
      %v847 = vsel %vm663, %v792, 0
      %849 = vmatpush.msra.mxu0 0.0
      %850 = vmatpush.msra.mxu0 0.0
      %851 = vmatpush.msra.mxu0 0.0
      %852 = vmatpush.msra.mxu0 0.0
      %853 = vmatpush.msra.mxu0 0.0
      %854 = vmatpush.msra.mxu0 0.0
      %855 = vmatpush.msra.mxu0 0.0
      %856 = vmatpush.msra.mxu0 0.0
      %857 = vmatpush.msra.mxu0 0.0
      %858 = vmatpush.msra.mxu0 0.0
      %859 = vmatpush.msra.mxu0 0.0
      %860 = vmatpush.msra.mxu0 0.0
      %861 = vmatpush.msra.mxu0 %v796
      %862 = vmatpush.msra.mxu0 %v795
      %863 = vmatpush.msra.mxu0 %v794
      %864 = vmatpush.msra.mxu0 %v793
      %865 = vmatmul.f32.gmra.mxu0 %v802
      %v866 = vpop.f32.mrf.mxu0
      %v867 = vadd.f32 %v799, %v866
      %868 = vmatmul.f32.gmra.mxu0 %v805
      %v869 = vpop.f32.mrf.mxu0
      %v870 = vadd.f32 %v799, %v869
      %871 = vmatmul.f32.gmra.mxu0 %v808
      %v872 = vpop.f32.mrf.mxu0
      %v873 = vadd.f32 %v799, %v872
      %874 = vmatmul.f32.gmra.mxu0 %v811
      %v875 = vpop.f32.mrf.mxu0
      %v876 = vadd.f32 %v799, %v875
      %877 = vmatmul.f32.gmra.mxu0 %v814
      %v878 = vpop.f32.mrf.mxu0
      %v879 = vadd.f32 %v799, %v878
      %880 = vmatmul.f32.gmra.mxu0 %v817
      %v881 = vpop.f32.mrf.mxu0
      %v882 = vadd.f32 %v799, %v881
      %883 = vmatmul.f32.gmra.mxu0 %v820
      %v884 = vpop.f32.mrf.mxu0
      %v885 = vadd.f32 %v799, %v884
      %886 = vmatmul.f32.gmra.mxu0 %v823
      %v887 = vpop.f32.mrf.mxu0
      %v888 = vadd.f32 %v799, %v887
      %889 = vmatmul.f32.gmra.mxu0 %v826
      %v890 = vpop.f32.mrf.mxu0
      %v891 = vadd.f32 %v799, %v890
      %892 = vmatmul.f32.gmra.mxu0 %v829
      %v893 = vpop.f32.mrf.mxu0
      %v894 = vadd.f32 %v799, %v893
      %895 = vmatmul.f32.gmra.mxu0 %v832
      %v896 = vpop.f32.mrf.mxu0
      %v897 = vadd.f32 %v799, %v896
      %898 = vmatmul.f32.gmra.mxu0 %v835
      %v899 = vpop.f32.mrf.mxu0
      %v900 = vadd.f32 %v799, %v899
      %901 = vmatmul.f32.gmra.mxu0 %v838
      %v902 = vpop.f32.mrf.mxu0
      %v903 = vadd.f32 %v799, %v902
      %904 = vmatmul.f32.gmra.mxu0 %v841
      %v905 = vpop.f32.mrf.mxu0
      %v906 = vadd.f32 %v799, %v905
      %907 = vmatmul.f32.gmra.mxu0 %v844
      %v908 = vpop.f32.mrf.mxu0
      %v909 = vadd.f32 %v799, %v908
      %910 = vmatmul.f32.gmra.mxu0 %v847
      %v911 = vpop.f32.mrf.mxu0
      %v912 = vadd.f32 %v799, %v911
      %913 = vdwg.mxu0
      %vm914 = vcmask 130048
      %915 = vst.msk [vmem:[%s356] sm:$0xff] %vm914, %v867
      %916 = vst.msk [vmem:[%s356 + $0x8] sm:$0xff] %vm914, %v870
      %917 = vst.msk [vmem:[%s356 + $0x10] sm:$0xff] %vm914, %v873
      %918 = vst.msk [vmem:[%s356 + $0x18] sm:$0xff] %vm914, %v876
      %919 = vst.msk [vmem:[%s356 + $0x20] sm:$0xff] %vm914, %v879
      %920 = vst.msk [vmem:[%s356 + $0x28] sm:$0xff] %vm914, %v882
      %921 = vst.msk [vmem:[%s356 + $0x30] sm:$0xff] %vm914, %v885
      %922 = vst.msk [vmem:[%s356 + $0x38] sm:$0xff] %vm914, %v888
      %923 = vst.msk [vmem:[%s356 + $0x40] sm:$0xff] %vm914, %v891
      %924 = vst.msk [vmem:[%s356 + $0x48] sm:$0xff] %vm914, %v894
      %925 = vst.msk [vmem:[%s356 + $0x50] sm:$0xff] %vm914, %v897
      %926 = vst.msk [vmem:[%s356 + $0x58] sm:$0xff] %vm914, %v900
      %927 = vst.msk [vmem:[%s356 + $0x60] sm:$0xff] %vm914, %v903
      %928 = vst.msk [vmem:[%s356 + $0x68] sm:$0xff] %vm914, %v906
      %929 = vst.msk [vmem:[%s356 + $0x70] sm:$0xff] %vm914, %v909
      %930 = vst.msk [vmem:[%s356 + $0x78] sm:$0xff] %vm914, %v912
      %s931 = smul.u32 16, %s20
      %p932 = scmp.lt.s32.totalorder %s931, 31
      %s933 = scalar_select %p932, %s931, 31
      %s934 = smul.addr %s933, 8
      %s935 = scalar_lea.vmem %s9, %s934
      // Predicated region
      $region57: #{tpu_custom_call.1} parent=55 // pred_check
        %p936 = pneg %p237
      $region58: #{tpu_custom_call.1} parent=55 // pred_check_branch
        %938 = sbr.rel (%p936) target = $region60
      $region59: #{tpu_custom_call.1} parent=55 // pred_region
        %s939 = smul.u32 16, %s20
      $region60: #{tpu_custom_call.1} parent=55 // pred_fallthru
        _
    $region56: #{tpu_custom_call.1} parent=5 // pred_fallthru
      _
    %p940 = scmp.le.s32.totalorder 2, %s15
    // Predicated region
    $region61: #{tpu_custom_call.1} parent=5 // pred_check
      %p941 = pneg %p940
    $region62: #{tpu_custom_call.1} parent=5 // pred_check_branch
      %943 = sbr.rel (%p941) target = $region64
    $region63: #{tpu_custom_call.1} parent=5 // pred_region
      %s944 = ssub.s32 %s15, 2
      // Predicated region
      $region65: #{tpu_custom_call.1} parent=63 // pred_check
        %p945 = pneg %p243
      $region66: #{tpu_custom_call.1} parent=63 // pred_check_branch
        %947 = sbr.rel (%p945) target = $region68
      $region67: #{tpu_custom_call.1} parent=63 // pred_region
        %s948 = smul.u32 16, %s21
        %p949 = scmp.lt.s32.totalorder %s948, 31
        %s950 = scalar_select %p949, %s948, 31
        %s951 = smul.addr %s950, 8
        %s952 = scalar_lea.vmem %s9, %s951
      $region68: #{tpu_custom_call.1} parent=63 // pred_fallthru
        _
    $region64: #{tpu_custom_call.1} parent=5 // pred_fallthru
      _
  $region6: #{tpu_custom_call.1} parent=0 // loop_footer
    %s19 = sadd.s32 1, %s15
  $region7: #{tpu_custom_call.1} parent=0 // loop_footer_branch
    %14 = sbr.rel target = $region3
  $region8: #{tpu_custom_call.1} parent=0 // loop_exit
    _

</llo_original>
